<compile_context>
chip_gen: v5e
topology: v5e:2x2
jax: 0.10.0
libtpu: 0.0.40
codegen_flags: <defaults>
</compile_context>

<pallas_src>
import functools
import math

import jax
import jax.numpy as jnp
from jax.experimental import pallas as pl
from jax.experimental.pallas import tpu as pltpu


_LOG_SQRT_2PI = 0.5 * math.log(2.0 * math.pi)


def _round_up(x, m):
    return ((x + m - 1) // m) * m


def policy_kernel(x_ref, w0_ref, b0_ref, w1_ref, b1_ref,
                  wh_ref, bh_ref, std_ref, lpc_ref, noise_ref,
                  out_ref, *, n_act):
    """Fused Policy forward.

    Output slab lanes:
      [0, n_act)        action   = tanh(actor logits) + std * noise
      [n_act, 2*n_act)  log_prob = -0.5*noise^2 - log(std) - log(sqrt(2*pi))
      [2*n_act]         value    = critic head output
      rest              zero padding
    """
    # trunk: two ReLU layers on the MXU (f32 accumulation)
    h = jnp.dot(x_ref[...], w0_ref[...], preferred_element_type=jnp.float32) + b0_ref[...]
    h = jnp.maximum(h, 0.0)
    h = jnp.dot(h, w1_ref[...], preferred_element_type=jnp.float32) + b1_ref[...]
    h = jnp.maximum(h, 0.0)

    # fused actor+critic heads: one lane-dense MXU push
    z = jnp.dot(h, wh_ref[...], preferred_element_type=jnp.float32) + bh_ref[...]

    noise = noise_ref[...]                      # noise copies at lanes [0,nA) and [nA,2nA)
    col = jax.lax.broadcasted_iota(jnp.int32, z.shape, 1)
    is_actor = col < n_act
    # actor lanes:  tanh(z) + std*noise          (std is zero outside [0,nA))
    # other lanes:  z - 0.5*noise^2 + lpc        (z is value / 0; noise & lpc are zero
    #                                             outside their own lane ranges)
    out_ref[...] = jnp.where(
        is_actor,
        jnp.tanh(z) + std_ref[...] * noise,
        z - 0.5 * noise * noise + lpc_ref[...],
    )


def policy_forward(x, params, noise):
    """x: (B, nS) f32; noise: (B, nA) standard-normal (Normal(mean,std).sample())."""
    B, nS = x.shape
    nA = noise.shape[-1]
    w0 = params["w0"]
    nS_pad = w0.shape[0]
    n_slab = params["w_heads"].shape[-1]
    B_pad = _round_up(B, 8)
    f32 = jnp.float32

    # pad input to full (8,128) vreg tiles (zero rows/cols are inert in the matmul)
    x_p = jnp.zeros((B_pad, nS_pad), f32).at[:B, :nS].set(x.astype(f32))

    # batch-invariant distribution stats, hoisted out of the kernel
    std = jax.nn.softplus(params["std"].astype(f32))      # (1, nA), numerically stable
    log_std = jnp.log(std)

    std_slab = jnp.zeros((1, n_slab), f32).at[:, :nA].set(std)
    lpc_slab = jnp.zeros((1, n_slab), f32).at[:, nA:2 * nA].set(-(log_std + _LOG_SQRT_2PI))
    noise_slab = (jnp.zeros((B_pad, n_slab), f32)
                  .at[:B, :nA].set(noise)
                  .at[:B, nA:2 * nA].set(noise))

    vmem = functools.partial(pl.BlockSpec, memory_space=pltpu.MemorySpace.VMEM)
    slab = pl.pallas_call(
        functools.partial(policy_kernel, n_act=nA),
        out_shape=jax.ShapeDtypeStruct((B_pad, n_slab), f32),
        in_specs=[vmem() for _ in range(10)],
        out_specs=vmem(),
    )(x_p, w0, params["b0"], params["w1"], params["b1"],
      params["w_heads"], params["b_heads"], std_slab, lpc_slab, noise_slab)

    action = slab[:B, :nA]
    log_prob = slab[:B, nA:2 * nA]
    value = slab[:B, 2 * nA:2 * nA + 1]
    entropy = jnp.broadcast_to(0.5 + _LOG_SQRT_2PI + log_std, (B, nA))
    return action, log_prob, entropy, value


def init_params(key, nS, nA, hidden_dims=(128, 128)):
    """Deterministic init mirroring the PyTorch module's reset_parameters.

    hidden_init uses fan_in = weight.size()[0] (== out_features for nn.Linear),
    so lim = 1/sqrt(out_features) for the input & hidden layers; critic weights
    uniform(-3e-3, 3e-3); biases keep the default nn.Linear init (±1/sqrt(in_features));
    actor_output weights keep the default init; std parameter is zeros(1, nA).
    """
    ks = jax.random.split(key, 8)
    H0, H1 = hidden_dims
    nS_pad = _round_up(nS, 128)
    n_slab = _round_up(2 * nA + 1, 128)

    def u(k, shape, lim):
        return jax.random.uniform(k, shape, jnp.float32, -lim, lim)

    w0 = u(ks[0], (nS, H0), 1.0 / math.sqrt(H0))
    b0 = u(ks[1], (1, H0), 1.0 / math.sqrt(nS))
    w1 = u(ks[2], (H0, H1), 1.0 / math.sqrt(H1))
    b1 = u(ks[3], (1, H1), 1.0 / math.sqrt(H0))
    wa = u(ks[4], (H1, nA), 1.0 / math.sqrt(H1))   # actor head: default Linear init
    ba = u(ks[5], (1, nA), 1.0 / math.sqrt(H1))
    wc = u(ks[6], (H1, 1), 0.003)                  # critic weight: uniform(-3e-3, 3e-3)
    bc = u(ks[7], (1, 1), 1.0 / math.sqrt(H1))

    # pad input-layer rows to a lane-friendly nS (zero rows contribute nothing)
    w0_p = jnp.zeros((nS_pad, H0), jnp.float32).at[:nS, :].set(w0)
    # fuse actor + critic heads into one lane-dense weight:
    #   lanes [0, nA) -> actor logits, lane 2*nA -> value, rest zero.
    w_heads = (jnp.zeros((H1, n_slab), jnp.float32)
               .at[:, :nA].set(wa)
               .at[:, 2 * nA:2 * nA + 1].set(wc))
    b_heads = (jnp.zeros((1, n_slab), jnp.float32)
               .at[:, :nA].set(ba)
               .at[:, 2 * nA:2 * nA + 1].set(bc))

    return {"w0": w0_p, "b0": b0, "w1": w1, "b1": b1,
            "w_heads": w_heads, "b_heads": b_heads,
            "std": jnp.zeros((1, nA), jnp.float32)}


if __name__ == "__main__":
    key = jax.random.PRNGKey(0)
    k_param, k_state, k_noise = jax.random.split(key, 3)

    B, nS, nA = 8, 32, 8
    params = init_params(k_param, nS, nA, hidden_dims=(128, 128))
    state = jax.random.normal(k_state, (B, nS), jnp.float32)
    noise = jax.random.normal(k_noise, (B, nA), jnp.float32)  # Normal(mean, std).sample()

    action, log_prob, entropy, value = policy_forward(state, params, noise)
    jax.block_until_ready((action, log_prob, entropy, value))

    assert action.shape == (B, nA)
    assert log_prob.shape == (B, nA)
    assert entropy.shape == (B, nA)
    assert value.shape == (B, 1)
    assert bool(jnp.all(jnp.isfinite(action)))
    assert bool(jnp.all(jnp.isfinite(log_prob)))
    assert bool(jnp.all(jnp.isfinite(value)))
    print("KERNEL_OK")
</pallas_src>

<mosaic_0001>
module attributes {stable_mosaic.version = 11 : i64} {
  func.func @policy_kernel(%arg0: memref<8x128xf32, #tpu.memory_space<vmem>>, %arg1: memref<128x128xf32, #tpu.memory_space<vmem>>, %arg2: memref<1x128xf32, #tpu.memory_space<vmem>>, %arg3: memref<128x128xf32, #tpu.memory_space<vmem>>, %arg4: memref<1x128xf32, #tpu.memory_space<vmem>>, %arg5: memref<128x128xf32, #tpu.memory_space<vmem>>, %arg6: memref<1x128xf32, #tpu.memory_space<vmem>>, %arg7: memref<1x128xf32, #tpu.memory_space<vmem>>, %arg8: memref<1x128xf32, #tpu.memory_space<vmem>>, %arg9: memref<8x128xf32, #tpu.memory_space<vmem>>, %arg10: memref<8x128xf32, #tpu.memory_space<vmem>>) attributes {dimension_semantics = [], scalar_prefetch = 0 : i64, scratch_operands = 0 : i64, tpu.core_type = #tpu.core_type<tc>} {
    %c0 = arith.constant 0 : index
    %c0_0 = arith.constant 0 : index
    %0 = vector.load %arg0[%c0, %c0_0] : memref<8x128xf32, #tpu.memory_space<vmem>>, vector<8x128xf32>
    %c0_1 = arith.constant 0 : index
    %c0_2 = arith.constant 0 : index
    %1 = vector.load %arg1[%c0_1, %c0_2] : memref<128x128xf32, #tpu.memory_space<vmem>>, vector<128x128xf32>
    %cst = arith.constant dense<0.000000e+00> : vector<8x128xf32>
    %2 = tpu.matmul %0, %1, %cst {dimension_numbers = #tpu.dot_dimension_numbers<[1], [0], [0], [1], [0, 0, 1, 1], [], []>} : vector<8x128xf32>, vector<128x128xf32>, vector<8x128xf32> -> vector<8x128xf32>
    %c0_3 = arith.constant 0 : index
    %c0_4 = arith.constant 0 : index
    %3 = vector.load %arg2[%c0_3, %c0_4] : memref<1x128xf32, #tpu.memory_space<vmem>>, vector<1x128xf32>
    %4 = vector.broadcast %3 : vector<1x128xf32> to vector<8x128xf32>
    %5 = arith.addf %2, %4 : vector<8x128xf32>
    %cst_5 = arith.constant 0.000000e+00 : f32
    %6 = vector.broadcast %cst_5 : f32 to vector<8x128xf32>
    %7 = arith.maximumf %5, %6 : vector<8x128xf32>
    %c0_6 = arith.constant 0 : index
    %c0_7 = arith.constant 0 : index
    %8 = vector.load %arg3[%c0_6, %c0_7] : memref<128x128xf32, #tpu.memory_space<vmem>>, vector<128x128xf32>
    %cst_8 = arith.constant dense<0.000000e+00> : vector<8x128xf32>
    %9 = tpu.matmul %7, %8, %cst_8 {dimension_numbers = #tpu.dot_dimension_numbers<[1], [0], [0], [1], [0, 0, 1, 1], [], []>} : vector<8x128xf32>, vector<128x128xf32>, vector<8x128xf32> -> vector<8x128xf32>
    %c0_9 = arith.constant 0 : index
    %c0_10 = arith.constant 0 : index
    %10 = vector.load %arg4[%c0_9, %c0_10] : memref<1x128xf32, #tpu.memory_space<vmem>>, vector<1x128xf32>
    %11 = vector.broadcast %10 : vector<1x128xf32> to vector<8x128xf32>
    %12 = arith.addf %9, %11 : vector<8x128xf32>
    %cst_11 = arith.constant 0.000000e+00 : f32
    %13 = vector.broadcast %cst_11 : f32 to vector<8x128xf32>
    %14 = arith.maximumf %12, %13 : vector<8x128xf32>
    %c0_12 = arith.constant 0 : index
    %c0_13 = arith.constant 0 : index
    %15 = vector.load %arg5[%c0_12, %c0_13] : memref<128x128xf32, #tpu.memory_space<vmem>>, vector<128x128xf32>
    %cst_14 = arith.constant dense<0.000000e+00> : vector<8x128xf32>
    %16 = tpu.matmul %14, %15, %cst_14 {dimension_numbers = #tpu.dot_dimension_numbers<[1], [0], [0], [1], [0, 0, 1, 1], [], []>} : vector<8x128xf32>, vector<128x128xf32>, vector<8x128xf32> -> vector<8x128xf32>
    %c0_15 = arith.constant 0 : index
    %c0_16 = arith.constant 0 : index
    %17 = vector.load %arg6[%c0_15, %c0_16] : memref<1x128xf32, #tpu.memory_space<vmem>>, vector<1x128xf32>
    %18 = vector.broadcast %17 : vector<1x128xf32> to vector<8x128xf32>
    %19 = arith.addf %16, %18 : vector<8x128xf32>
    %c0_17 = arith.constant 0 : index
    %c0_18 = arith.constant 0 : index
    %20 = vector.load %arg9[%c0_17, %c0_18] : memref<8x128xf32, #tpu.memory_space<vmem>>, vector<8x128xf32>
    %21 = tpu.iota {dimensions = array<i32: 1>} : vector<8x128xi32>
    %c8_i32 = arith.constant 8 : i32
    %22 = vector.broadcast %c8_i32 : i32 to vector<8x128xi32>
    %23 = arith.cmpi slt, %21, %22 : vector<8x128xi32>
    %24 = math.tanh %19 : vector<8x128xf32>
    %c0_19 = arith.constant 0 : index
    %c0_20 = arith.constant 0 : index
    %25 = vector.load %arg7[%c0_19, %c0_20] : memref<1x128xf32, #tpu.memory_space<vmem>>, vector<1x128xf32>
    %26 = vector.broadcast %25 : vector<1x128xf32> to vector<8x128xf32>
    %27 = arith.mulf %26, %20 : vector<8x128xf32>
    %28 = arith.addf %24, %27 : vector<8x128xf32>
    %cst_21 = arith.constant 5.000000e-01 : f32
    %29 = vector.broadcast %cst_21 : f32 to vector<8x128xf32>
    %30 = arith.mulf %29, %20 : vector<8x128xf32>
    %31 = arith.mulf %30, %20 : vector<8x128xf32>
    %32 = arith.subf %19, %31 : vector<8x128xf32>
    %c0_22 = arith.constant 0 : index
    %c0_23 = arith.constant 0 : index
    %33 = vector.load %arg8[%c0_22, %c0_23] : memref<1x128xf32, #tpu.memory_space<vmem>>, vector<1x128xf32>
    %34 = vector.broadcast %33 : vector<1x128xf32> to vector<8x128xf32>
    %35 = arith.addf %32, %34 : vector<8x128xf32>
    %36 = arith.select %23, %28, %35 : vector<8x128xi1>, vector<8x128xf32>
    %c0_24 = arith.constant 0 : index
    %c0_25 = arith.constant 0 : index
    %37 = vector.load %arg10[%c0_24, %c0_25] : memref<8x128xf32, #tpu.memory_space<vmem>>, vector<8x128xf32>
    tpu.vector_store %arg10[%c0_24, %c0_25], %36 {strides = array<i32>} : memref<8x128xf32, #tpu.memory_space<vmem>>, vector<8x128xf32>,
    return
  }
}

</mosaic_0001>

<llo_original>
// kernel: tpu_custom_call.1
$region0: #{tpu_custom_call.1}
  #allocation0 [shape = 'u32[]', space=smem, size = 0x4, offset = 0x4, fixed_abs, tag = 'smem constant byte address 0x4 - core index']
  #allocation1 [shape = 'u32[72,128]{1,0:T(1,128)}', space=vmem, size = 0x9000, scoped, tag = 'internal scratch']
  %s0 = inlined_call_operand.hbm [shape: f32[8,128], index: 0, kind: input, shape index: {}]
  %s1 = inlined_call_operand.hbm [shape: f32[128,128], index: 1, kind: input, shape index: {}]
  %s2 = inlined_call_operand.hbm [shape: f32[1,128], index: 2, kind: input, shape index: {}]
  %s3 = inlined_call_operand.hbm [shape: f32[128,128], index: 3, kind: input, shape index: {}]
  %s4 = inlined_call_operand.hbm [shape: f32[1,128], index: 4, kind: input, shape index: {}]
  %s5 = inlined_call_operand.hbm [shape: f32[128,128], index: 5, kind: input, shape index: {}]
  %s6 = inlined_call_operand.hbm [shape: f32[1,128], index: 6, kind: input, shape index: {}]
  %s7 = inlined_call_operand.hbm [shape: f32[1,128], index: 7, kind: input, shape index: {}]
  %s8 = inlined_call_operand.hbm [shape: f32[1,128], index: 8, kind: input, shape index: {}]
  %s9 = inlined_call_operand.vmem [shape: f32[8,128], index: 9, kind: input, shape index: {}]
  %s10 = inlined_call_operand.hbm [shape: f32[8,128], index: 10, kind: output, shape index: {}]
  %s11 = sld [smem:[#allocation0]]
  $region86: #{tpu_custom_call.1} parent=0
    _
  %s13 = ssub.s32 1, %s11
  %s14 = scalar_select 0, %s13, %s11
  $region1: #{tpu_custom_call.1} parent=0
    #allocation2 [shape = 'u8[4096]{0}', space=vmem, size = 0x1000, scoped, tag = 'input window, operand 0, single buffered']
    #allocation3 [shape = 's32[1]{0}', space=sflag, size = 0x4, scoped, tag = 'scoped memory for tpu_custom_call.1']
    #allocation4 [shape = 's32[1]{0}', space=sflag, size = 0x4, scoped, tag = 'scoped memory for tpu_custom_call.1']
    #allocation5 [shape = 'u8[65536]{0}', space=vmem, size = 0x10000, scoped, tag = 'input window, operand 1, single buffered']
    #allocation6 [shape = 's32[1]{0}', space=sflag, size = 0x4, scoped, tag = 'scoped memory for tpu_custom_call.1']
    #allocation7 [shape = 'u8[512]{0}', space=vmem, size = 0x400, scoped, tag = 'input window, operand 2, single buffered']
    #allocation8 [shape = 'u8[65536]{0}', space=vmem, size = 0x10000, scoped, tag = 'input window, operand 3, single buffered']
    #allocation9 [shape = 's32[1]{0}', space=sflag, size = 0x4, scoped, tag = 'scoped memory for tpu_custom_call.1']
    #allocation10 [shape = 'u8[512]{0}', space=vmem, size = 0x400, scoped, tag = 'input window, operand 4, single buffered']
    #allocation11 [shape = 'u8[65536]{0}', space=vmem, size = 0x10000, scoped, tag = 'input window, operand 5, single buffered']
    #allocation12 [shape = 's32[1]{0}', space=sflag, size = 0x4, scoped, tag = 'scoped memory for tpu_custom_call.1']
    #allocation13 [shape = 'u8[512]{0}', space=vmem, size = 0x400, scoped, tag = 'input window, operand 6, single buffered']
    #allocation14 [shape = 'u8[512]{0}', space=vmem, size = 0x400, scoped, tag = 'input window, operand 7, single buffered']
    #allocation15 [shape = 's32[1]{0}', space=sflag, size = 0x4, scoped, tag = 'scoped memory for tpu_custom_call.1']
    #allocation16 [shape = 'u8[512]{0}', space=vmem, size = 0x400, scoped, tag = 'input window, operand 8, single buffered']
    #allocation17 [shape = 'u8[4096]{0}', space=vmem, size = 0x1000, scoped, tag = 'output window, operand 0, single buffered']
    %15 = vsyncpa [#allocation3], 0
    %16 = vsyncpa [#allocation6], 0
    %17 = vsyncpa [#allocation9], 0
    %18 = vsyncpa [#allocation12], 0
    %19 = vsyncpa [#allocation15], 0
    %20 = vsyncpa [#allocation4], 0
    // Predicated region
    $region2: #{tpu_custom_call.1} parent=1 // pred_check
      _
    $region3: #{tpu_custom_call.1} parent=1 // pred_check_branch
      %22 = sbr.rel (0) target = $region5
    $region4: #{tpu_custom_call.1} parent=1 // pred_region
      %24 = vsyncadd [#allocation3], 0
      %s26 = sshll.u32 %s0, 4
      %s27 = int_to_ptr.hbm [resolvable:$true] %s26
      %s28 = sshll.u32 [#allocation2], 4
      %s29 = int_to_ptr.vmem [resolvable:$true] %s28
      %31 = dma.hbm_to_vmem [thread:$0]  %s27, 128, %s29, [#allocation3]
    $region5: #{tpu_custom_call.1} parent=1 // pred_fallthru
      _
    // Predicated region
    $region6: #{tpu_custom_call.1} parent=1 // pred_check
      _
    $region7: #{tpu_custom_call.1} parent=1 // pred_check_branch
      %33 = sbr.rel (0) target = $region9
    $region8: #{tpu_custom_call.1} parent=1 // pred_region
      %35 = vsyncadd [#allocation6], 0
      %s36 = sshll.u32 %s1, 4
      %s37 = int_to_ptr.hbm [resolvable:$true] %s36
      %s38 = sshll.u32 [#allocation5], 4
      %s39 = int_to_ptr.vmem [resolvable:$true] %s38
      %44 = dma.hbm_to_vmem [thread:$0]  %s37, 2048, %s39, [#allocation6], 128, 128, 8
    $region9: #{tpu_custom_call.1} parent=1 // pred_fallthru
      _
    // Predicated region
    $region10: #{tpu_custom_call.1} parent=1 // pred_check
      _
    $region11: #{tpu_custom_call.1} parent=1 // pred_check_branch
      %46 = sbr.rel (0) target = $region13
    $region12: #{tpu_custom_call.1} parent=1 // pred_region
      %48 = vsyncadd [#allocation6], 0
      %s50 = sshll.u32 %s2, 4
      %s51 = int_to_ptr.hbm [resolvable:$true] %s50
      %s52 = sshll.u32 [#allocation7], 4
      %s53 = int_to_ptr.vmem [resolvable:$true] %s52
      %55 = dma.hbm_to_vmem [thread:$0]  %s51, 16, %s53, [#allocation6]
    $region13: #{tpu_custom_call.1} parent=1 // pred_fallthru
      _
    // Predicated region
    $region14: #{tpu_custom_call.1} parent=1 // pred_check
      _
    $region15: #{tpu_custom_call.1} parent=1 // pred_check_branch
      %57 = sbr.rel (0) target = $region17
    $region16: #{tpu_custom_call.1} parent=1 // pred_region
      %59 = vsyncadd [#allocation9], 0
      %s60 = sshll.u32 %s3, 4
      %s61 = int_to_ptr.hbm [resolvable:$true] %s60
      %s62 = sshll.u32 [#allocation8], 4
      %s63 = int_to_ptr.vmem [resolvable:$true] %s62
      %68 = dma.hbm_to_vmem [thread:$0]  %s61, 2048, %s63, [#allocation9], 128, 128, 8
    $region17: #{tpu_custom_call.1} parent=1 // pred_fallthru
      _
    // Predicated region
    $region18: #{tpu_custom_call.1} parent=1 // pred_check
      _
    $region19: #{tpu_custom_call.1} parent=1 // pred_check_branch
      %70 = sbr.rel (0) target = $region21
    $region20: #{tpu_custom_call.1} parent=1 // pred_region
      %72 = vsyncadd [#allocation9], 0
      %s74 = sshll.u32 %s4, 4
      %s75 = int_to_ptr.hbm [resolvable:$true] %s74
      %s76 = sshll.u32 [#allocation10], 4
      %s77 = int_to_ptr.vmem [resolvable:$true] %s76
      %79 = dma.hbm_to_vmem [thread:$0]  %s75, 16, %s77, [#allocation9]
    $region21: #{tpu_custom_call.1} parent=1 // pred_fallthru
      _
    // Predicated region
    $region22: #{tpu_custom_call.1} parent=1 // pred_check
      _
    $region23: #{tpu_custom_call.1} parent=1 // pred_check_branch
      %81 = sbr.rel (0) target = $region25
    $region24: #{tpu_custom_call.1} parent=1 // pred_region
      %83 = vsyncadd [#allocation12], 0
      %s84 = sshll.u32 %s5, 4
      %s85 = int_to_ptr.hbm [resolvable:$true] %s84
      %s86 = sshll.u32 [#allocation11], 4
      %s87 = int_to_ptr.vmem [resolvable:$true] %s86
      %92 = dma.hbm_to_vmem [thread:$0]  %s85, 2048, %s87, [#allocation12], 128, 128, 8
    $region25: #{tpu_custom_call.1} parent=1 // pred_fallthru
      _
    // Predicated region
    $region26: #{tpu_custom_call.1} parent=1 // pred_check
      _
    $region27: #{tpu_custom_call.1} parent=1 // pred_check_branch
      %94 = sbr.rel (0) target = $region29
    $region28: #{tpu_custom_call.1} parent=1 // pred_region
      %96 = vsyncadd [#allocation12], 0
      %s98 = sshll.u32 %s6, 4
      %s99 = int_to_ptr.hbm [resolvable:$true] %s98
      %s100 = sshll.u32 [#allocation13], 4
      %s101 = int_to_ptr.vmem [resolvable:$true] %s100
      %103 = dma.hbm_to_vmem [thread:$0]  %s99, 16, %s101, [#allocation12]
    $region29: #{tpu_custom_call.1} parent=1 // pred_fallthru
      _
    // Predicated region
    $region30: #{tpu_custom_call.1} parent=1 // pred_check
      _
    $region31: #{tpu_custom_call.1} parent=1 // pred_check_branch
      %105 = sbr.rel (0) target = $region33
    $region32: #{tpu_custom_call.1} parent=1 // pred_region
      %107 = vsyncadd [#allocation15], 0
      %s109 = sshll.u32 %s7, 4
      %s110 = int_to_ptr.hbm [resolvable:$true] %s109
      %s111 = sshll.u32 [#allocation14], 4
      %s112 = int_to_ptr.vmem [resolvable:$true] %s111
      %114 = dma.hbm_to_vmem [thread:$0]  %s110, 16, %s112, [#allocation15]
    $region33: #{tpu_custom_call.1} parent=1 // pred_fallthru
      _
    // Predicated region
    $region34: #{tpu_custom_call.1} parent=1 // pred_check
      _
    $region35: #{tpu_custom_call.1} parent=1 // pred_check_branch
      %116 = sbr.rel (0) target = $region37
    $region36: #{tpu_custom_call.1} parent=1 // pred_region
      %118 = vsyncadd [#allocation15], 0
      %s120 = sshll.u32 %s8, 4
      %s121 = int_to_ptr.hbm [resolvable:$true] %s120
      %s122 = sshll.u32 [#allocation16], 4
      %s123 = int_to_ptr.vmem [resolvable:$true] %s122
      %125 = dma.hbm_to_vmem [thread:$0]  %s121, 16, %s123, [#allocation15]
    $region37: #{tpu_custom_call.1} parent=1 // pred_fallthru
      _
    // Predicated region
    $region38: #{tpu_custom_call.1} parent=1 // pred_check
      _
    $region39: #{tpu_custom_call.1} parent=1 // pred_check_branch
      %127 = sbr.rel (0) target = $region41
    $region40: #{tpu_custom_call.1} parent=1 // pred_region
      _
    $region41: #{tpu_custom_call.1} parent=1 // pred_fallthru
      _
    // Predicated region
    $region42: #{tpu_custom_call.1} parent=1 // pred_check
      _
    $region43: #{tpu_custom_call.1} parent=1 // pred_check_branch
      %129 = sbr.rel (0) target = $region45
    $region44: #{tpu_custom_call.1} parent=1 // pred_region
      %131 = dma.done [#allocation3], 128
    $region45: #{tpu_custom_call.1} parent=1 // pred_fallthru
      _
    // Predicated region
    $region46: #{tpu_custom_call.1} parent=1 // pred_check
      _
    $region47: #{tpu_custom_call.1} parent=1 // pred_check_branch
      %133 = sbr.rel (0) target = $region49
    $region48: #{tpu_custom_call.1} parent=1 // pred_region
      %135 = dma.done [#allocation6], 2048
    $region49: #{tpu_custom_call.1} parent=1 // pred_fallthru
      _
    // Predicated region
    $region50: #{tpu_custom_call.1} parent=1 // pred_check
      _
    $region51: #{tpu_custom_call.1} parent=1 // pred_check_branch
      %137 = sbr.rel (0) target = $region53
    $region52: #{tpu_custom_call.1} parent=1 // pred_region
      %139 = dma.done [#allocation6], 16
    $region53: #{tpu_custom_call.1} parent=1 // pred_fallthru
      _
    // Predicated region
    $region54: #{tpu_custom_call.1} parent=1 // pred_check
      _
    $region55: #{tpu_custom_call.1} parent=1 // pred_check_branch
      %141 = sbr.rel (0) target = $region57
    $region56: #{tpu_custom_call.1} parent=1 // pred_region
      %143 = dma.done [#allocation9], 2048
    $region57: #{tpu_custom_call.1} parent=1 // pred_fallthru
      _
    // Predicated region
    $region58: #{tpu_custom_call.1} parent=1 // pred_check
      _
    $region59: #{tpu_custom_call.1} parent=1 // pred_check_branch
      %145 = sbr.rel (0) target = $region61
    $region60: #{tpu_custom_call.1} parent=1 // pred_region
      %147 = dma.done [#allocation9], 16
    $region61: #{tpu_custom_call.1} parent=1 // pred_fallthru
      _
    // Predicated region
    $region62: #{tpu_custom_call.1} parent=1 // pred_check
      _
    $region63: #{tpu_custom_call.1} parent=1 // pred_check_branch
      %149 = sbr.rel (0) target = $region65
    $region64: #{tpu_custom_call.1} parent=1 // pred_region
      %151 = dma.done [#allocation12], 2048
    $region65: #{tpu_custom_call.1} parent=1 // pred_fallthru
      _
    // Predicated region
    $region66: #{tpu_custom_call.1} parent=1 // pred_check
      _
    $region67: #{tpu_custom_call.1} parent=1 // pred_check_branch
      %153 = sbr.rel (0) target = $region69
    $region68: #{tpu_custom_call.1} parent=1 // pred_region
      %155 = dma.done [#allocation12], 16
    $region69: #{tpu_custom_call.1} parent=1 // pred_fallthru
      _
    // Predicated region
    $region70: #{tpu_custom_call.1} parent=1 // pred_check
      _
    $region71: #{tpu_custom_call.1} parent=1 // pred_check_branch
      %157 = sbr.rel (0) target = $region73
    $region72: #{tpu_custom_call.1} parent=1 // pred_region
      %159 = dma.done [#allocation15], 16
    $region73: #{tpu_custom_call.1} parent=1 // pred_fallthru
      _
    // Predicated region
    $region74: #{tpu_custom_call.1} parent=1 // pred_check
      _
    $region75: #{tpu_custom_call.1} parent=1 // pred_check_branch
      %161 = sbr.rel (0) target = $region77
    $region76: #{tpu_custom_call.1} parent=1 // pred_region
      %163 = dma.done [#allocation15], 16
    $region77: #{tpu_custom_call.1} parent=1 // pred_fallthru
      _
    %v164 = vld [vmem:[#allocation2] sm:$0xff]
    %v165 = vld [vmem:[#allocation5] sm:$0xff]
    %v166 = vld [vmem:[#allocation5 + $0x8] sm:$0xff]
    %v167 = vld [vmem:[#allocation5 + $0x10] sm:$0xff]
    %v168 = vld [vmem:[#allocation5 + $0x18] sm:$0xff]
    %v169 = vld [vmem:[#allocation5 + $0x20] sm:$0xff]
    %v170 = vld [vmem:[#allocation5 + $0x28] sm:$0xff]
    %v171 = vld [vmem:[#allocation5 + $0x30] sm:$0xff]
    %v172 = vld [vmem:[#allocation5 + $0x38] sm:$0xff]
    %v173 = vld [vmem:[#allocation5 + $0x40] sm:$0xff]
    %v174 = vld [vmem:[#allocation5 + $0x48] sm:$0xff]
    %v175 = vld [vmem:[#allocation5 + $0x50] sm:$0xff]
    %v176 = vld [vmem:[#allocation5 + $0x58] sm:$0xff]
    %v177 = vld [vmem:[#allocation5 + $0x60] sm:$0xff]
    %v178 = vld [vmem:[#allocation5 + $0x68] sm:$0xff]
    %v179 = vld [vmem:[#allocation5 + $0x70] sm:$0xff]
    %v180 = vld [vmem:[#allocation5 + $0x78] sm:$0xff]
    %v181 = vld [vmem:[#allocation7] sm:$0x1]
    %v183 = vperm.slane %v181, 0
    %185 = vmatpush.msra.mxu0 %v180
    %186 = vmatpush.msra.mxu0 %v179
    %187 = vmatpush.msra.mxu0 %v178
    %188 = vmatpush.msra.mxu0 %v177
    %189 = vmatpush.msra.mxu0 %v176
    %190 = vmatpush.msra.mxu0 %v175
    %191 = vmatpush.msra.mxu0 %v174
    %192 = vmatpush.msra.mxu0 %v173
    %193 = vmatpush.msra.mxu0 %v172
    %194 = vmatpush.msra.mxu0 %v171
    %195 = vmatpush.msra.mxu0 %v170
    %196 = vmatpush.msra.mxu0 %v169
    %197 = vmatpush.msra.mxu0 %v168
    %198 = vmatpush.msra.mxu0 %v167
    %199 = vmatpush.msra.mxu0 %v166
    %200 = vmatpush.msra.mxu0 %v165
    %201 = vmatmul.f32.gmra.mxu0 %v164
    %v202 = vpop.f32.mrf.mxu0
    %v203 = vadd.f32 %v183, %v202
    %204 = vdwg.mxu0
    %v205 = vmax.f32 %v203, 0.0
    %v206 = vld [vmem:[#allocation8] sm:$0xff]
    %v207 = vld [vmem:[#allocation8 + $0x8] sm:$0xff]
    %v208 = vld [vmem:[#allocation8 + $0x10] sm:$0xff]
    %v209 = vld [vmem:[#allocation8 + $0x18] sm:$0xff]
    %v210 = vld [vmem:[#allocation8 + $0x20] sm:$0xff]
    %v211 = vld [vmem:[#allocation8 + $0x28] sm:$0xff]
    %v212 = vld [vmem:[#allocation8 + $0x30] sm:$0xff]
    %v213 = vld [vmem:[#allocation8 + $0x38] sm:$0xff]
    %v214 = vld [vmem:[#allocation8 + $0x40] sm:$0xff]
    %v215 = vld [vmem:[#allocation8 + $0x48] sm:$0xff]
    %v216 = vld [vmem:[#allocation8 + $0x50] sm:$0xff]
    %v217 = vld [vmem:[#allocation8 + $0x58] sm:$0xff]
    %v218 = vld [vmem:[#allocation8 + $0x60] sm:$0xff]
    %v219 = vld [vmem:[#allocation8 + $0x68] sm:$0xff]
    %v220 = vld [vmem:[#allocation8 + $0x70] sm:$0xff]
    %v221 = vld [vmem:[#allocation8 + $0x78] sm:$0xff]
    %v222 = vld [vmem:[#allocation10] sm:$0x1]
    %v224 = vperm.slane %v222, 0
    %226 = vmatpush.msra.mxu0 %v221
    %227 = vmatpush.msra.mxu0 %v220
    %228 = vmatpush.msra.mxu0 %v219
    %229 = vmatpush.msra.mxu0 %v218
    %230 = vmatpush.msra.mxu0 %v217
    %231 = vmatpush.msra.mxu0 %v216
    %232 = vmatpush.msra.mxu0 %v215
    %233 = vmatpush.msra.mxu0 %v214
    %234 = vmatpush.msra.mxu0 %v213
    %235 = vmatpush.msra.mxu0 %v212
    %236 = vmatpush.msra.mxu0 %v211
    %237 = vmatpush.msra.mxu0 %v210
    %238 = vmatpush.msra.mxu0 %v209
    %239 = vmatpush.msra.mxu0 %v208
    %240 = vmatpush.msra.mxu0 %v207
    %241 = vmatpush.msra.mxu0 %v206
    %242 = vmatmul.f32.gmra.mxu0 %v205
    %v243 = vpop.f32.mrf.mxu0
    %v244 = vadd.f32 %v224, %v243
    %245 = vdwg.mxu0
    %v246 = vmax.f32 %v244, 0.0
    %v247 = vld [vmem:[#allocation11] sm:$0xff]
    %v248 = vld [vmem:[#allocation11 + $0x8] sm:$0xff]
    %v249 = vld [vmem:[#allocation11 + $0x10] sm:$0xff]
    %v250 = vld [vmem:[#allocation11 + $0x18] sm:$0xff]
    %v251 = vld [vmem:[#allocation11 + $0x20] sm:$0xff]
    %v252 = vld [vmem:[#allocation11 + $0x28] sm:$0xff]
    %v253 = vld [vmem:[#allocation11 + $0x30] sm:$0xff]
    %v254 = vld [vmem:[#allocation11 + $0x38] sm:$0xff]
    %v255 = vld [vmem:[#allocation11 + $0x40] sm:$0xff]
    %v256 = vld [vmem:[#allocation11 + $0x48] sm:$0xff]
    %v257 = vld [vmem:[#allocation11 + $0x50] sm:$0xff]
    %v258 = vld [vmem:[#allocation11 + $0x58] sm:$0xff]
    %v259 = vld [vmem:[#allocation11 + $0x60] sm:$0xff]
    %v260 = vld [vmem:[#allocation11 + $0x68] sm:$0xff]
    %v261 = vld [vmem:[#allocation11 + $0x70] sm:$0xff]
    %v262 = vld [vmem:[#allocation11 + $0x78] sm:$0xff]
    %v263 = vld [vmem:[#allocation13] sm:$0x1]
    %v265 = vperm.slane %v263, 0
    %267 = vmatpush.msra.mxu0 %v262
    %268 = vmatpush.msra.mxu0 %v261
    %269 = vmatpush.msra.mxu0 %v260
    %270 = vmatpush.msra.mxu0 %v259
    %271 = vmatpush.msra.mxu0 %v258
    %272 = vmatpush.msra.mxu0 %v257
    %273 = vmatpush.msra.mxu0 %v256
    %274 = vmatpush.msra.mxu0 %v255
    %275 = vmatpush.msra.mxu0 %v254
    %276 = vmatpush.msra.mxu0 %v253
    %277 = vmatpush.msra.mxu0 %v252
    %278 = vmatpush.msra.mxu0 %v251
    %279 = vmatpush.msra.mxu0 %v250
    %280 = vmatpush.msra.mxu0 %v249
    %281 = vmatpush.msra.mxu0 %v248
    %282 = vmatpush.msra.mxu0 %v247
    %283 = vmatmul.f32.gmra.mxu0 %v246
    %v284 = vpop.f32.mrf.mxu0
    %v285 = vadd.f32 %v265, %v284
    %286 = vdwg.mxu0
    %v287 = vld [vmem:[%s9] sm:$0xff]
    %v288 = vlaneseq
    %v289 = vand.u32 %v288, 127
    %vm290 = vcmp.lt.s32.totalorder %v289, 8
    %v291 = vtanh.pop %v285
    %v292 = vld [vmem:[#allocation14] sm:$0x1]
    %v294 = vperm.slane %v292, 0
    %v296 = vmul.f32 %v294, %v287
    %v297 = vadd.f32 %v291, %v296
    %v298 = vmul.f32 %v287, 0.5
    %v299 = vmul.f32 %v298, %v287
    %v300 = vsub.f32 %v285, %v299
    %v301 = vld [vmem:[#allocation16] sm:$0x1]
    %v303 = vperm.slane %v301, 0
    %v305 = vadd.f32 %v300, %v303
    %v306 = vsel %vm290, %v297, %v305
    %307 = vst [vmem:[#allocation17] sm:$0xff] %v306
    // Predicated region
    $region78: #{tpu_custom_call.1} parent=1 // pred_check
      _
    $region79: #{tpu_custom_call.1} parent=1 // pred_check_branch
      %309 = sbr.rel (0) target = $region81
    $region80: #{tpu_custom_call.1} parent=1 // pred_region
      %311 = vsyncadd [#allocation4], 0
      %s313 = sshll.u32 [#allocation17], 4
      %s314 = int_to_ptr.vmem [resolvable:$true] %s313
      %s315 = sshll.u32 %s10, 4
      %s316 = int_to_ptr.hbm [resolvable:$true] %s315
      %318 = dma.vmem_to_hbm [thread:$0]  %s314, 128, %s316, [#allocation4]
    $region81: #{tpu_custom_call.1} parent=1 // pred_fallthru
      _
    // Predicated region
    $region82: #{tpu_custom_call.1} parent=1 // pred_check
      _
    $region83: #{tpu_custom_call.1} parent=1 // pred_check_branch
      %320 = sbr.rel (0) target = $region85
    $region84: #{tpu_custom_call.1} parent=1 // pred_region
      %322 = dma.done [#allocation4], 128
    $region85: #{tpu_custom_call.1} parent=1 // pred_fallthru
      _
    %323 = vsyncpa [#allocation3], 1
    %324 = vsyncpa [#allocation6], 1
    %325 = vsyncpa [#allocation9], 1
    %326 = vsyncpa [#allocation12], 1
    %327 = vsyncpa [#allocation15], 1
    %328 = vsyncpa [#allocation4], 1

</llo_original>
